<compile_context>
chip_gen: v6e
topology: v6e:2x2x1
jax: 0.10.0
libtpu: 0.0.40
codegen_flags: <defaults>
</compile_context>

<pallas_src>
import math
import functools
from typing import NamedTuple

import jax
import jax.numpy as jnp
from jax import lax
from jax.experimental import pallas as pl
from jax.experimental.pallas import tpu as pltpu

_INV_SQRT2 = 1.0 / math.sqrt(2.0)


def _round_up(x: int, mult: int) -> int:
    return ((x + mult - 1) // mult) * mult


def _cdiv(a: int, b: int) -> int:
    return (a + b - 1) // b


def _vmem_capacity_bytes() -> int:
    """Physical VMEM per core (generation aware), conservative fallback if unknown."""
    try:
        cap = getattr(pltpu.get_tpu_info(), "vmem_capacity_bytes", None)
        if cap:
            return int(cap)
    except Exception:
        pass
    return 64 << 20  # conservative: v7x


def _vmem_budget_bytes() -> int:
    # Leave headroom for Mosaic-internal scratch; stay well above the 16/32 MiB default
    # scoped limit on v5e/v6e, and <= ~56 MiB on v7x (64 MiB physical).
    cap = _vmem_capacity_bytes()
    return max(32 << 20, min(cap - (8 << 20), 112 << 20))


def _maybe_buffered_spec(block_shape, index_map, *, buffers):
    """Weight-tile BlockSpec, triple-buffered when the tile changes across the grid."""
    if buffers > 2:
        try:
            return pl.BlockSpec(block_shape, index_map, pipeline_mode=pl.Buffered(buffers))
        except Exception:
            pass  # older API without pipeline_mode: fall back to default depth-2
    return pl.BlockSpec(block_shape, index_map)


# ----------------------------------------------------------------------------- kernels


def _geglu_kernel(x_ref, w_ref, b_ref, o_ref):
    """Untiled-K path: one fused (tm, K) x (K, 2*tn) MXU matmul, f32 accumulation."""
    tn = o_ref.shape[-1]
    acc = jnp.dot(x_ref[...], w_ref[0], preferred_element_type=jnp.float32)
    acc = acc + b_ref[...]                       # bias kept in f32
    h = acc[:, :tn]                              # value half (lane-aligned split)
    g = acc[:, tn:]                              # gate half
    # Exact erf GELU (matches torch F.gelu default).  For small dim_in the cheaper tanh
    # approximation (EUP slot) can be swapped in if the model tolerates it.
    gelu_g = 0.5 * g * (1.0 + lax.erf(g * _INV_SQRT2))
    o_ref[...] = (h * gelu_g).astype(o_ref.dtype)


def _geglu_kernel_ktiled(x_ref, w_ref, b_ref, o_ref, acc_ref):
    """K-tiled fallback for very large dim_in: f32 VMEM accumulator, epilogue at last k."""
    tn = o_ref.shape[-1]
    k = pl.program_id(2)

    @pl.when(k == 0)
    def _():
        acc_ref[...] = jnp.zeros_like(acc_ref)

    acc_ref[...] += jnp.dot(x_ref[...], w_ref[0], preferred_element_type=jnp.float32)

    @pl.when(k == pl.num_programs(2) - 1)
    def _():
        acc = acc_ref[...] + b_ref[...]
        h = acc[:, :tn]
        g = acc[:, tn:]
        gelu_g = 0.5 * g * (1.0 + lax.erf(g * _INV_SQRT2))
        o_ref[...] = (h * gelu_g).astype(o_ref.dtype)


# ------------------------------------------------------------------------ param prep


class GEGLUParams(NamedTuple):
    w: jax.Array    # (n_tiles, dim_in_p, 2*tn): tile j = [Wv_j | Wg_j], contiguous in HBM
    b: jax.Array    # (1, n_tiles * 2 * tn), float32, same per-tile layout
    dim_in: int
    dim_out: int
    tn: int


def prepare_geglu_params(weight, bias, *, tn=None, compute_dtype=jnp.bfloat16):
    """One-time parameter prep (NOT per forward step).

    weight: (2*dim_out, dim_in)  -- torch nn.Linear layout (proj.weight)
    bias:   (2*dim_out,)         -- proj.bias
    tn baked into the layout is carried inside GEGLUParams so it cannot get out of sync.
    """
    two_dim_out, dim_in = weight.shape
    assert two_dim_out % 2 == 0
    dim_out = two_dim_out // 2

    if tn is None:
        # Generation-aware default: 128 MiB VMEM chips (v5e/v6e) -> tn=512 keeps the bf16
        # path compute-bound (arith. intensity ~2*tn flops/B vs v6e ridge ~650 flops/B);
        # 64 MiB chips (v7x) -> tn=256 is already compute-bound at 3.2 TB/s HBM.
        tn = 512 if _vmem_capacity_bytes() >= (96 << 20) else 256
    tn = max(128, _round_up(min(tn, _round_up(dim_out, 128)), 128))

    n_pad = _round_up(dim_out, tn)
    n_tiles = n_pad // tn
    dim_in_p = _round_up(dim_in, 128)

    w_t = jnp.asarray(weight, jnp.float32).T                 # (dim_in, 2*dim_out)
    wv = jnp.pad(w_t[:, :dim_out], ((0, dim_in_p - dim_in), (0, n_pad - dim_out)))
    wg = jnp.pad(w_t[:, dim_out:], ((0, dim_in_p - dim_in), (0, n_pad - dim_out)))
    wv = wv.reshape(dim_in_p, n_tiles, tn)
    wg = wg.reshape(dim_in_p, n_tiles, tn)
    w_fused = jnp.concatenate([wv, wg], axis=-1)             # (dim_in_p, n_tiles, 2*tn)
    w_fused = jnp.transpose(w_fused, (1, 0, 2))              # (n_tiles, dim_in_p, 2*tn)
    if compute_dtype is not None:
        w_fused = w_fused.astype(compute_dtype)              # bf16 MXU operands by default

    b = jnp.asarray(bias, jnp.float32)
    bv = jnp.pad(b[:dim_out], (0, n_pad - dim_out)).reshape(n_tiles, 1, tn)
    bg = jnp.pad(b[dim_out:], (0, n_pad - dim_out)).reshape(n_tiles, 1, tn)
    b_fused = jnp.concatenate([bv, bg], axis=-1).reshape(1, n_tiles * 2 * tn)

    return GEGLUParams(w_fused, b_fused, int(dim_in), int(dim_out), int(tn))


# -------------------------------------------------------------------------- forward


def geglu(x, params: GEGLUParams, *, tm_max=None):
    """GEGLU forward: x (..., dim_in) -> (..., dim_out)."""
    if tm_max is None:
        # Big-VMEM chips can afford a larger M tile for big-M workloads.
        tm_max = 1024 if _vmem_budget_bytes() >= (96 << 20) else 512
    return _geglu_impl(x, params.w, params.b, dim_in=params.dim_in,
                       dim_out=params.dim_out, tn=params.tn, tm_max=int(tm_max))


@functools.partial(jax.jit, static_argnames=("dim_in", "dim_out", "tn", "tm_max"))
def _geglu_impl(x, w_fused, b_fused, *, dim_in, dim_out, tn, tm_max):
    assert x.shape[-1] == dim_in
    n_tiles, dim_in_p, two_tn = w_fused.shape
    assert two_tn == 2 * tn, "tn mismatch between prepared params and call"

    lead = x.shape[:-1]
    m = int(math.prod(lead)) if lead else 1
    x2d = x.reshape(m, dim_in)

    # Zero-pad the contraction dim (no effect on the matmul) and cast to the MXU operand
    # dtype.  Both are no-ops in the aligned / already-cast case; otherwise XLA fuses
    # them into a single pass over x.
    if dim_in_p != dim_in:
        x2d = jnp.pad(x2d, ((0, 0), (0, dim_in_p - dim_in)))
    if x2d.dtype != w_fused.dtype:
        x2d = x2d.astype(w_fused.dtype)

    # Ragged M / N are handled by Pallas boundary-block clipping: no wrapper-side M pad
    # and no output slice copy.  Garbage rows of the last M block are never written back.
    tm = min(tm_max, _round_up(m, 8))
    m_tiles = _cdiv(m, tm)

    ib = jnp.dtype(w_fused.dtype).itemsize            # MXU operand bytes
    ob = jnp.dtype(x.dtype).itemsize                  # output bytes
    budget = _vmem_budget_bytes()
    # Triple-buffer the weight tile only when there are N-tile transitions to hide.
    wbuf = 3 if (n_tiles > 1 and m_tiles > 1) else 2

    def footprint(tk, wbuf_):
        return (2 * tm * tk * ib                      # x blocks (double-buffered)
                + wbuf_ * tk * 2 * tn * ib            # fused weight blocks
                + 2 * tm * tn * ob                    # output blocks
                + tm * 2 * tn * 4                     # f32 matmul result / accumulator
                + 2 * (2 * tn) * 4                    # bias blocks
                + (2 << 20))                          # slack for Mosaic internals

    use_ktile = footprint(dim_in_p, wbuf) > budget

    if not use_ktile:
        # Weight-resident scheme: each weight tile leaves HBM exactly once.
        grid = (n_tiles, m_tiles)
        in_specs = [
            pl.BlockSpec((tm, dim_in_p), lambda j, i: (i, 0)),                 # x tile
            _maybe_buffered_spec((1, dim_in_p, 2 * tn), lambda j, i: (j, 0, 0),
                                 buffers=wbuf),                                # fused W tile
            pl.BlockSpec((1, 2 * tn), lambda j, i: (0, j)),                    # fused bias
        ]
        out_specs = pl.BlockSpec((tm, tn), lambda j, i: (i, j))
        scratch_shapes = []
        kernel = _geglu_kernel
        dims = ("parallel", "parallel")
    else:
        # K-tiling fallback: caps VMEM independent of dim_in (keeps tm/tn on v7x 64 MiB).
        # tk must be a 128-multiple divisor of dim_in_p so no K block reads out of bounds.
        c = dim_in_p // 128
        d = c
        while d > 1 and (c % d != 0 or footprint(128 * d, 2) > budget):
            d -= 1
        tk = 128 * d
        k_tiles = dim_in_p // tk
        grid = (n_tiles, m_tiles, k_tiles)
        in_specs = [
            pl.BlockSpec((tm, tk), lambda j, i, k: (i, k)),
            pl.BlockSpec((1, tk, 2 * tn), lambda j, i, k: (j, k, 0)),
            pl.BlockSpec((1, 2 * tn), lambda j, i, k: (0, j)),
        ]
        out_specs = pl.BlockSpec((tm, tn), lambda j, i, k: (i, j))
        scratch_shapes = [pltpu.VMEM((tm, 2 * tn), jnp.float32)]
        kernel = _geglu_kernel_ktiled
        dims = ("parallel", "parallel", "arbitrary")

    out2d = pl.pallas_call(
        kernel,
        out_shape=jax.ShapeDtypeStruct((m, dim_out), x.dtype),
        grid_spec=pltpu.PrefetchScalarGridSpec(
            num_scalar_prefetch=0,
            grid=grid,
            in_specs=in_specs,
            out_specs=out_specs,
            scratch_shapes=scratch_shapes,
        ),
        compiler_params=pltpu.CompilerParams(
            # Both N and M are parallel -> on v7x megacore the compiler can shard M even
            # when dim_out yields a single N tile, keeping both TensorCores busy.
            dimension_semantics=dims,
            vmem_limit_bytes=budget,
        ),
    )(x2d, w_fused, b_fused)

    return out2d.reshape(*lead, dim_out)


# ------------------------------------------------------------------------ reference


def _reference(x, weight, bias, dim_out):
    proj = x @ weight.T + bias
    h, g = proj[..., :dim_out], proj[..., dim_out:]
    return h * (0.5 * g * (1.0 + lax.erf(g * _INV_SQRT2)))


if __name__ == "__main__":
    key = jax.random.PRNGKey(0)
    kx, kw, kb, k2 = jax.random.split(key, 4)

    # Module-consistent small shapes: batch=2, seq=8, dim_in=32, dim_out=32.
    batch, seq, dim_in, dim_out = 2, 8, 32, 32
    x = jax.random.normal(kx, (batch, seq, dim_in), dtype=jnp.float32)
    bound = 1.0 / math.sqrt(dim_in)
    weight = jax.random.uniform(kw, (2 * dim_out, dim_in),
                                minval=-bound, maxval=bound, dtype=jnp.float32)
    bias = jax.random.uniform(kb, (2 * dim_out,),
                              minval=-bound, maxval=bound, dtype=jnp.float32)
    ref = _reference(x, weight, bias, dim_out)

    # Test 1: default bf16 MXU operands (f32 accumulation) — the fast path.
    params_bf16 = prepare_geglu_params(weight, bias)                  # once per param set
    out = jax.block_until_ready(geglu(x, params_bf16))
    assert out.shape == (batch, seq, dim_out), out.shape
    assert jnp.allclose(out, ref, atol=3e-2, rtol=3e-2), "bf16 path mismatch"

    # Test 2: f32 operands — exact torch-parity path.
    params_f32 = prepare_geglu_params(weight, bias, compute_dtype=jnp.float32)
    out_f32 = jax.block_until_ready(geglu(x, params_f32))
    assert out_f32.shape == (batch, seq, dim_out)
    assert jnp.allclose(out_f32, ref, atol=1e-5, rtol=1e-5), "f32 path mismatch"

    # Test 3: ragged M/N/K exercising boundary clipping and a multi-tile grid (f32, exact).
    b2, s2, din2, dout2 = 3, 50, 96, 200
    kx2, kw2, kb2 = jax.random.split(k2, 3)
    x2 = jax.random.normal(kx2, (b2, s2, din2), dtype=jnp.float32)
    bound2 = 1.0 / math.sqrt(din2)
    weight2 = jax.random.uniform(kw2, (2 * dout2, din2),
                                 minval=-bound2, maxval=bound2, dtype=jnp.float32)
    bias2 = jax.random.uniform(kb2, (2 * dout2,),
                               minval=-bound2, maxval=bound2, dtype=jnp.float32)
    params2 = prepare_geglu_params(weight2, bias2, tn=128, compute_dtype=jnp.float32)
    out2 = jax.block_until_ready(geglu(x2, params2, tm_max=64))
    ref2 = _reference(x2, weight2, bias2, dout2)
    assert out2.shape == (b2, s2, dout2), out2.shape
    assert jnp.allclose(out2, ref2, atol=1e-5, rtol=1e-5), "ragged path mismatch"

    print("KERNEL_OK")
</pallas_src>

<mosaic_0001>
module attributes {stable_mosaic.version = 11 : i64} {
  func.func @_geglu_kernel(%arg0: i32, %arg1: i32, %arg2: memref<16x128xbf16, #tpu.memory_space<vmem>>, %arg3: memref<1x128x256xbf16, #tpu.memory_space<vmem>>, %arg4: memref<1x256xf32, #tpu.memory_space<vmem>>, %arg5: memref<16x128xf32, #tpu.memory_space<vmem>>) attributes {dimension_semantics = [#tpu.dimension_semantics<parallel>, #tpu.dimension_semantics<parallel>], iteration_bounds = array<i64: 1, 1>, scalar_prefetch = 0 : i64, scratch_operands = 0 : i64, tpu.core_type = #tpu.core_type<tc>, window_params = [{transform_indices = @transform_0, window_bounds = array<i64: 16, 128>}, {transform_indices = @transform_1, window_bounds = array<i64: 1, 128, 256>}, {transform_indices = @transform_2, window_bounds = array<i64: 1, 256>}, {transform_indices = @transform_3, window_bounds = array<i64: 16, 128>}]} {
    %c0 = arith.constant 0 : index
    %c0_0 = arith.constant 0 : index
    %0 = vector.load %arg2[%c0, %c0_0] : memref<16x128xbf16, #tpu.memory_space<vmem>>, vector<16x128xbf16>
    %c0_1 = arith.constant 0 : index
    %c0_2 = arith.constant 0 : index
    %c0_3 = arith.constant 0 : index
    %1 = vector.load %arg3[%c0_1, %c0_2, %c0_3] : memref<1x128x256xbf16, #tpu.memory_space<vmem>>, vector<1x128x256xbf16>
    %2 = vector.shape_cast %1 : vector<1x128x256xbf16> to vector<128x256xbf16>
    %cst = arith.constant dense<0.000000e+00> : vector<16x256xf32>
    %3 = tpu.matmul %0, %2, %cst {dimension_numbers = #tpu.dot_dimension_numbers<[1], [0], [0], [1], [0, 0, 1, 1], [], []>} : vector<16x128xbf16>, vector<128x256xbf16>, vector<16x256xf32> -> vector<16x256xf32>
    %c0_4 = arith.constant 0 : index
    %c0_5 = arith.constant 0 : index
    %4 = vector.load %arg4[%c0_4, %c0_5] : memref<1x256xf32, #tpu.memory_space<vmem>>, vector<1x256xf32>
    %5 = vector.broadcast %4 : vector<1x256xf32> to vector<16x256xf32>
    %6 = arith.addf %3, %5 : vector<16x256xf32>
    %7 = vector.extract_strided_slice %6 {offsets = [0, 0], sizes = [16, 128], strides = [1, 1]} : vector<16x256xf32> to vector<16x128xf32>
    %8 = vector.extract_strided_slice %6 {offsets = [0, 128], sizes = [16, 128], strides = [1, 1]} : vector<16x256xf32> to vector<16x128xf32>
    %cst_6 = arith.constant 5.000000e-01 : f32
    %9 = vector.broadcast %cst_6 : f32 to vector<16x128xf32>
    %10 = arith.mulf %9, %8 : vector<16x128xf32>
    %cst_7 = arith.constant 0.707106769 : f32
    %11 = vector.broadcast %cst_7 : f32 to vector<16x128xf32>
    %12 = arith.mulf %8, %11 : vector<16x128xf32>
    %13 = math.erf %12 : vector<16x128xf32>
    %cst_8 = arith.constant 1.000000e+00 : f32
    %14 = vector.broadcast %cst_8 : f32 to vector<16x128xf32>
    %15 = arith.addf %14, %13 : vector<16x128xf32>
    %16 = arith.mulf %10, %15 : vector<16x128xf32>
    %17 = arith.mulf %7, %16 : vector<16x128xf32>
    %c0_9 = arith.constant 0 : index
    %c0_10 = arith.constant 0 : index
    %18 = vector.load %arg5[%c0_9, %c0_10] : memref<16x128xf32, #tpu.memory_space<vmem>>, vector<16x128xf32>
    tpu.vector_store %arg5[%c0_9, %c0_10], %17 {strides = array<i32>} : memref<16x128xf32, #tpu.memory_space<vmem>>, vector<16x128xf32>,
    return
  }
  func.func @transform_0(%arg0: i32, %arg1: i32) -> (i32, i32) {
    %c0_i32 = arith.constant 0 : i32
    %c0_i32_0 = arith.constant 0 : i32
    return %arg1, %c0_i32 : i32, i32
  }
  func.func @transform_1(%arg0: i32, %arg1: i32) -> (i32, i32, i32) {
    %c0_i32 = arith.constant 0 : i32
    %c0_i32_0 = arith.constant 0 : i32
    %c0_i32_1 = arith.constant 0 : i32
    return %arg0, %c0_i32, %c0_i32_0 : i32, i32, i32
  }
  func.func @transform_2(%arg0: i32, %arg1: i32) -> (i32, i32) {
    %c0_i32 = arith.constant 0 : i32
    %c0_i32_0 = arith.constant 0 : i32
    return %c0_i32, %arg0 : i32, i32
  }
  func.func @transform_3(%arg0: i32, %arg1: i32) -> (i32, i32) {
    %c0_i32 = arith.constant 0 : i32
    return %arg1, %arg0 : i32, i32
  }
}

</mosaic_0001>

<llo_original>
// kernel: _geglu_impl.1
$region0: #{_geglu_impl.1}
  #allocation0 [shape = 'u32[]', space=smem, size = 0x4, offset = 0x4, fixed_abs, tag = 'smem constant byte address 0x4 - core index']
  #allocation1 [shape = 'u32[144,128]{1,0:T(1,128)}', space=vmem, size = 0x12000, scoped, tag = 'internal scratch']
  %s0 = inlined_call_operand.vmem [shape: bf16[16,128], index: 0, kind: input, shape index: {}]
  %s1 = inlined_call_operand.hbm [shape: bf16[1,128,256], index: 1, kind: input, shape index: {}]
  %s2 = inlined_call_operand.vmem [shape: f32[1,256], index: 2, kind: input, shape index: {}]
  %s3 = inlined_call_operand.hbm [shape: f32[16,32], index: 3, kind: output, shape index: {}]
  %s4 = sld [smem:[#allocation0]]
  $region26: #{_geglu_impl.1} parent=0
    _
  %s6 = ssub.s32 1, %s4
  %s7 = scalar_select 0, %s6, %s4
  $region1: #{_geglu_impl.1} parent=0
    #allocation2 [shape = 'u8[65536]{0}', space=vmem, size = 0x10000, scoped, tag = 'input window, operand 1, single buffered']
    #allocation3 [shape = 's32[1]{0}', space=sflag, size = 0x4, scoped, tag = 'scoped memory for _geglu_impl.1']
    #allocation4 [shape = 's32[1]{0}', space=sflag, size = 0x4, scoped, tag = 'scoped memory for _geglu_impl.1']
    #allocation5 [shape = 'u8[8192]{0}', space=vmem, size = 0x2000, scoped, tag = 'output window, operand 0, single buffered']
    %8 = vsyncpa [#allocation3], 0
    %9 = vsyncpa [#allocation4], 0
    // Predicated region
    $region2: #{_geglu_impl.1} parent=1 // pred_check
      _
    $region3: #{_geglu_impl.1} parent=1 // pred_check_branch
      %11 = sbr.rel (0) target = $region5
    $region4: #{_geglu_impl.1} parent=1 // pred_region
      _
    $region5: #{_geglu_impl.1} parent=1 // pred_fallthru
      _
    // Predicated region
    $region6: #{_geglu_impl.1} parent=1 // pred_check
      _
    $region7: #{_geglu_impl.1} parent=1 // pred_check_branch
      %13 = sbr.rel (0) target = $region9
    $region8: #{_geglu_impl.1} parent=1 // pred_region
      %s15 = ssub.s32 2048, 2048
      %16 = vsyncadd [#allocation3], %s15
      %s17 = sshll.u32 [#allocation2], 4
      %s18 = int_to_ptr.vmem [resolvable:$true] %s17
      %23 = dma.hbm_to_vmem [thread:$0]  %s1, 2048, %s18, [#allocation3], 128, 128, 8
    $region9: #{_geglu_impl.1} parent=1 // pred_fallthru
      _
    // Predicated region
    $region10: #{_geglu_impl.1} parent=1 // pred_check
      _
    $region11: #{_geglu_impl.1} parent=1 // pred_check_branch
      %25 = sbr.rel (0) target = $region13
    $region12: #{_geglu_impl.1} parent=1 // pred_region
      _
    $region13: #{_geglu_impl.1} parent=1 // pred_fallthru
      _
    // Predicated region
    $region14: #{_geglu_impl.1} parent=1 // pred_check
      _
    $region15: #{_geglu_impl.1} parent=1 // pred_check_branch
      %27 = sbr.rel (0) target = $region17
    $region16: #{_geglu_impl.1} parent=1 // pred_region
      %28 = dma.done [#allocation3], 2048
    $region17: #{_geglu_impl.1} parent=1 // pred_fallthru
      _
    %v30 = vld [vmem:[%s0] sm:$0xf]
    %v31 = vld [vmem:[%s0 + $0x4] sm:$0xf]
    %v32 = vld [vmem:[#allocation2] sm:$0xff]
    %v33 = vld [vmem:[#allocation2 + $0x8] sm:$0xff]
    %v34 = vld [vmem:[#allocation2 + $0x10] sm:$0xff]
    %v35 = vld [vmem:[#allocation2 + $0x18] sm:$0xff]
    %v36 = vld [vmem:[#allocation2 + $0x20] sm:$0xff]
    %v37 = vld [vmem:[#allocation2 + $0x28] sm:$0xff]
    %v38 = vld [vmem:[#allocation2 + $0x30] sm:$0xff]
    %v39 = vld [vmem:[#allocation2 + $0x38] sm:$0xff]
    %v40 = vld [vmem:[#allocation2 + $0x40] sm:$0xff]
    %v41 = vld [vmem:[#allocation2 + $0x48] sm:$0xff]
    %v42 = vld [vmem:[#allocation2 + $0x50] sm:$0xff]
    %v43 = vld [vmem:[#allocation2 + $0x58] sm:$0xff]
    %v44 = vld [vmem:[#allocation2 + $0x60] sm:$0xff]
    %v45 = vld [vmem:[#allocation2 + $0x68] sm:$0xff]
    %v46 = vld [vmem:[#allocation2 + $0x70] sm:$0xff]
    %v47 = vld [vmem:[#allocation2 + $0x78] sm:$0xff]
    %v48 = vld [vmem:[%s2] sm:$0x3]
    %v50 = vlaneseq
    %v51 = vshrl.u32 %v50, 7
    %v52 = vsub.s32 0, %v51
    %v53 = vrot.slane %v48, %v52
    %v54 = vlaneseq
    %v55 = vshrl.u32 %v54, 7
    %v56 = vsub.s32 1, %v55
    %v57 = vrot.slane %v48, %v56
    %v62 = vunpack.c.l.b16 %v30
    %v63 = vunpack.c.l.b16 %v31
    %v64 = vpack.c.b16 %v63, %v62
    %v82 = vunpack.c.l.b16 %v32
    %v83 = vunpack.c.h.b16 %v32
    %v84 = vunpack.c.l.b16 %v33
    %v85 = vunpack.c.h.b16 %v33
    %v86 = vunpack.c.l.b16 %v34
    %v87 = vunpack.c.h.b16 %v34
    %v88 = vunpack.c.l.b16 %v35
    %v89 = vunpack.c.h.b16 %v35
    %v90 = vunpack.c.l.b16 %v36
    %v91 = vunpack.c.h.b16 %v36
    %v92 = vunpack.c.l.b16 %v37
    %v93 = vunpack.c.h.b16 %v37
    %v94 = vunpack.c.l.b16 %v38
    %v95 = vunpack.c.h.b16 %v38
    %v96 = vunpack.c.l.b16 %v39
    %v97 = vunpack.c.h.b16 %v39
    %v98 = vunpack.c.l.b16 %v40
    %v99 = vunpack.c.h.b16 %v40
    %v100 = vunpack.c.l.b16 %v41
    %v101 = vunpack.c.h.b16 %v41
    %v102 = vunpack.c.l.b16 %v42
    %v103 = vunpack.c.h.b16 %v42
    %v104 = vunpack.c.l.b16 %v43
    %v105 = vunpack.c.h.b16 %v43
    %v106 = vunpack.c.l.b16 %v44
    %v107 = vunpack.c.h.b16 %v44
    %v108 = vunpack.c.l.b16 %v45
    %v109 = vunpack.c.h.b16 %v45
    %v110 = vunpack.c.l.b16 %v46
    %v111 = vunpack.c.h.b16 %v46
    %v112 = vunpack.c.l.b16 %v47
    %v113 = vunpack.c.h.b16 %v47
    %v114 = vpack.c.b16 %v84, %v82
    %v115 = vpack.c.b16 %v85, %v83
    %v116 = vpack.c.b16 %v88, %v86
    %v117 = vpack.c.b16 %v89, %v87
    %v118 = vpack.c.b16 %v92, %v90
    %v119 = vpack.c.b16 %v93, %v91
    %v120 = vpack.c.b16 %v96, %v94
    %v121 = vpack.c.b16 %v97, %v95
    %v122 = vpack.c.b16 %v100, %v98
    %v123 = vpack.c.b16 %v101, %v99
    %v124 = vpack.c.b16 %v104, %v102
    %v125 = vpack.c.b16 %v105, %v103
    %v126 = vpack.c.b16 %v108, %v106
    %v127 = vpack.c.b16 %v109, %v107
    %v128 = vpack.c.b16 %v112, %v110
    %v129 = vpack.c.b16 %v113, %v111
    %146 = vmatprep.subr.bf16.mxu0 %v129
    %147 = vmatpush1.bf16.msra.mxu0 %v128
    %148 = vmatprep.subr.bf16.mxu0 %v127
    %149 = vmatpush1.bf16.msra.mxu0 %v126
    %150 = vmatprep.subr.bf16.mxu0 %v125
    %151 = vmatpush1.bf16.msra.mxu0 %v124
    %152 = vmatprep.subr.bf16.mxu0 %v123
    %153 = vmatpush1.bf16.msra.mxu0 %v122
    %154 = vmatprep.subr.bf16.mxu0 %v121
    %155 = vmatpush1.bf16.msra.mxu0 %v120
    %156 = vmatprep.subr.bf16.mxu0 %v119
    %157 = vmatpush1.bf16.msra.mxu0 %v118
    %158 = vmatprep.subr.bf16.mxu0 %v117
    %159 = vmatpush1.bf16.msra.mxu0 %v116
    %160 = vmatprep.subr.bf16.mxu0 %v115
    %161 = vmatpush1.bf16.msra.mxu0 %v114
    %162 = vmatprep.subr.bf16.mxu0 0
    %163 = vmatpush2.bf16.msra.mxu0 0
    %164 = vmatprep.subr.bf16.mxu0 0
    %165 = vmatpush2.bf16.msra.mxu0 0
    %166 = vmatprep.subr.bf16.mxu0 0
    %167 = vmatpush2.bf16.msra.mxu0 0
    %168 = vmatprep.subr.bf16.mxu0 0
    %169 = vmatpush2.bf16.msra.mxu0 0
    %170 = vmatprep.subr.bf16.mxu0 0
    %171 = vmatpush2.bf16.msra.mxu0 0
    %172 = vmatprep.subr.bf16.mxu0 0
    %173 = vmatpush2.bf16.msra.mxu0 0
    %174 = vmatprep.subr.bf16.mxu0 0
    %175 = vmatpush2.bf16.msra.mxu0 0
    %176 = vmatprep.subr.bf16.mxu0 0
    %177 = vmatpush2.bf16.msra.mxu0 0
    %178 = vmatprep.mubr.bf16.mxu0 0
    %179 = vmatmul.mubr.bf16.gmra.mxu0 %v64
    %v180 = vpop.f32.mrf.mxu0
    %v181 = vadd.f32 %v53, %v180
    %v182 = vpop.f32.mrf.mxu0
    %v183 = vadd.f32 %v57, %v182
    %v184 = vpop.f32.mrf.mxu0
    %v185 = vadd.f32 %v53, %v184
    %v186 = vpop.f32.mrf.mxu0
    %v187 = vadd.f32 %v57, %v186
    %188 = vdwg.mxu0
    %v189 = vmul.f32 %v183, 0.5
    %v190 = vmul.f32 %v187, 0.5
    %v191 = vmul.f32 %v183, 0.70710677
    %v192 = vmul.f32 %v187, 0.70710677
    %v193 = verf.f32.pop %v191
    %v194 = verf.f32.pop %v192
    %v195 = vadd.f32 %v193, 1.0
    %v196 = vadd.f32 %v194, 1.0
    %v197 = vmul.f32 %v189, %v195
    %v198 = vmul.f32 %v190, %v196
    %v199 = vmul.f32 %v181, %v197
    %v200 = vmul.f32 %v185, %v198
    %201 = vst [vmem:[#allocation5] sm:$0xff] %v199
    %202 = vst [vmem:[#allocation5 + $0x8] sm:$0xff] %v200
    // Predicated region
    $region18: #{_geglu_impl.1} parent=1 // pred_check
      _
    $region19: #{_geglu_impl.1} parent=1 // pred_check_branch
      %204 = sbr.rel (0) target = $region21
    $region20: #{_geglu_impl.1} parent=1 // pred_region
      %s206 = ssub.s32 256, 256
      %207 = vsyncadd [#allocation4], %s206
      %s208 = sshll.u32 [#allocation5], 4
      %s209 = int_to_ptr.vmem [resolvable:$true] %s208
      %214 = dma.vmem_to_hbm [thread:$0]  %s209, 256, %s3, [#allocation4], 128, 128, 8
    $region21: #{_geglu_impl.1} parent=1 // pred_fallthru
      _
    // Predicated region
    $region22: #{_geglu_impl.1} parent=1 // pred_check
      _
    $region23: #{_geglu_impl.1} parent=1 // pred_check_branch
      %216 = sbr.rel (0) target = $region25
    $region24: #{_geglu_impl.1} parent=1 // pred_region
      %217 = dma.done [#allocation4], 256
    $region25: #{_geglu_impl.1} parent=1 // pred_fallthru
      _
    %218 = vsyncpa [#allocation3], 1
    %219 = vsyncpa [#allocation4], 1

</llo_original>
